<compile_context>
chip_gen: v7x
topology: tpu7x:2x2x1
jax: 0.10.0
libtpu: 0.0.40
codegen_flags: <defaults>
</compile_context>

<pallas_src>
import math
import functools

import jax
import jax.numpy as jnp
from jax.experimental import pallas as pl
from jax.experimental.pallas import tpu as pltpu

_MIB = 1024 * 1024
_SMALL_BYPASS_BYTES = 512 * 1024     # below this, skip Pallas entirely
_MAX_TILE_BYTES = 8 * _MIB           # per-buffer cap (in+out are double-buffered)


def _scale_kernel(w_ref, o_ref, *, c):
    # Elementwise scale on the VPU. Multiply in f32 and cast back so low-precision
    # (e.g. bf16) weights match a float32 PyTorch parameter scale.
    o_ref[...] = (w_ref[...].astype(jnp.float32) * c).astype(o_ref.dtype)


def _vmem_budget_bytes():
    """Explicit scoped-VMEM limit: physical capacity minus headroom for Mosaic
    internal scratch, capped at 96 MiB. Conservative fallback assumes 64 MiB
    physical (v7x), which is safe on every generation."""
    cap = 64 * _MIB
    try:
        cap = int(pltpu.get_tpu_info().vmem_capacity_bytes)
    except Exception:
        pass
    return int(min(max(cap - 16 * _MIB, 16 * _MIB), 96 * _MIB))


def _pick_tm(rows, tm_max):
    """Largest row tile <= tm_max that is a multiple of 8, preferring one that
    divides rows evenly (no ragged masked last tile, even grid). Never shrinks
    the tile by more than 2x to chase an even divide."""
    hi = max(8, (tm_max // 8) * 8)
    t = hi
    while t >= max(8, hi // 2):
        if rows % t == 0:
            return t
        t -= 8
    return hi


def _dimension_semantics(n_steps):
    """On v7x (2 TensorCores) CORE_PARALLEL actually shards the row tiles across
    both cores (plain 'parallel' is measured near-neutral); elsewhere 'parallel'."""
    try:
        kind = jax.devices()[0].device_kind.lower()
    except Exception:
        kind = ""
    if "v7" in kind and n_steps >= 2 and n_steps % 2 == 0:
        cp = getattr(pltpu, "CORE_PARALLEL", None)
        if cp is not None:
            return (cp,)
    return ("parallel",)


def _pallas_scale_2d(w2, tm, c, vmem_limit):
    rows, cols = w2.shape
    n_steps = pl.cdiv(rows, tm)
    kernel = functools.partial(_scale_kernel, c=c)

    def run(dim_sem):
        return pl.pallas_call(
            kernel,
            out_shape=jax.ShapeDtypeStruct((rows, cols), w2.dtype),
            grid=(n_steps,),
            in_specs=[pl.BlockSpec((tm, cols), lambda i: (i, 0))],
            out_specs=pl.BlockSpec((tm, cols), lambda i: (i, 0)),
            compiler_params=pltpu.CompilerParams(
                dimension_semantics=dim_sem,
                vmem_limit_bytes=vmem_limit,
            ),
        )(w2)

    dim_sem = _dimension_semantics(n_steps)
    try:
        return run(dim_sem)
    except Exception:
        if dim_sem == ("parallel",):
            raise
        # CORE_PARALLEL rejected for this config: retry with plain "parallel".
        return run(("parallel",))


def equalized_weight(weight: jax.Array, *, force_pallas: bool = False) -> jax.Array:
    """Returns weight * (1 / sqrt(prod(shape[1:]))), matching EqualizedWeight.forward()."""
    shape = weight.shape
    fan_in = math.prod(shape[1:]) if len(shape) > 1 else 1
    c = 1.0 / math.sqrt(float(fan_in))  # static, baked into the kernel closure

    total = math.prod(shape) if len(shape) > 0 else 1
    nbytes = total * weight.dtype.itemsize

    # Small-tensor bypass: pallas_call fixed overhead >> memory traffic; XLA fuses
    # the scalar multiply into neighboring ops for free.
    if not force_pallas and nbytes < _SMALL_BYPASS_BYTES:
        return (weight.astype(jnp.float32) * c).astype(weight.dtype)

    vmem_limit = _vmem_budget_bytes()
    # 4 live buffers (in+out, double-buffered) plus headroom -> limit/8 per buffer.
    tile_bytes = min(vmem_limit // 8, _MAX_TILE_BYTES)

    # Lane-dense 2-D view: (rows, lane_width) with lane_width a multiple of 128.
    lane_width = None
    for cand in (2048, 1024, 512, 256, 128):
        if total % cand == 0:
            lane_width = cand
            break

    if lane_width is not None:
        rows = total // lane_width
    else:
        # Fallback (element count not a multiple of 128): keep the full trailing
        # dim as the lane dim (block dim == full array dim satisfies the layout
        # rule) and tile only the leading rows, so the whole array never has to
        # sit in VMEM. Stores on the edge are masked but correct.
        if len(shape) >= 2:
            rows = math.prod(shape[:-1])
            lane_width = shape[-1]
        else:
            rows, lane_width = 1, (shape[0] if len(shape) else 1)

    w2 = weight.reshape(rows, lane_width)

    bytes_per_row = lane_width * weight.dtype.itemsize
    tm_max = max(1, tile_bytes // bytes_per_row)
    if tm_max >= rows:
        tm = rows                      # single block with full dims
    else:
        tm = _pick_tm(rows, tm_max)    # multiple of 8, prefers an even divide

    out2 = _pallas_scale_2d(w2, tm, c, vmem_limit)
    return out2.reshape(shape)


def _ref(weight):
    fan_in = math.prod(weight.shape[1:]) if weight.ndim > 1 else 1
    return weight * (1.0 / math.sqrt(float(fan_in)))


if __name__ == "__main__":
    key = jax.random.PRNGKey(0)
    k0, k1, k2, k3 = jax.random.split(key, 4)

    # 1) Spec shape [in_features, out_features] — tiny, takes the jnp bypass.
    w_small = jax.random.normal(k0, (8, 32), dtype=jnp.float32)
    out_small = jax.block_until_ready(equalized_weight(w_small))
    assert out_small.shape == (8, 32) and out_small.dtype == jnp.float32
    assert bool(jnp.allclose(out_small, _ref(w_small), atol=1e-6, rtol=1e-6))

    # 1b) Same tensor forced through the Pallas path (single full-dim block).
    out_small_p = jax.block_until_ready(equalized_weight(w_small, force_pallas=True))
    assert bool(jnp.allclose(out_small_p, _ref(w_small), atol=1e-6, rtol=1e-6))

    # 2) Larger weight: lane-dense multi-tile pipelined path (even grid, tm | rows).
    w_big = jax.random.normal(k1, (2048, 2048), dtype=jnp.float32)
    out_big = jax.block_until_ready(equalized_weight(w_big))
    assert bool(jnp.allclose(out_big, _ref(w_big), atol=1e-6, rtol=1e-6))

    # 3) Odd element count (not a multiple of 128), large enough to skip the bypass:
    #    exercises the keep-last-dim fallback and a ragged (masked) last tile.
    w_odd = jax.random.normal(k2, (5000, 1001), dtype=jnp.float32)
    out_odd = jax.block_until_ready(equalized_weight(w_odd))
    assert bool(jnp.allclose(out_odd, _ref(w_odd), atol=1e-6, rtol=1e-6))

    # 4) bf16 weight: multiply in f32, cast back to bf16 (documented semantics).
    w_bf16 = jax.random.normal(k3, (64, 128), dtype=jnp.bfloat16)
    out_bf16 = jax.block_until_ready(equalized_weight(w_bf16, force_pallas=True))
    assert out_bf16.dtype == jnp.bfloat16
    assert bool(jnp.allclose(out_bf16.astype(jnp.float32),
                             _ref(w_bf16).astype(jnp.float32),
                             atol=1e-2, rtol=1e-2))

    print("KERNEL_OK")
</pallas_src>

<mosaic_0001>
module attributes {stable_mosaic.version = 11 : i64} {
  func.func @_scale_kernel(%arg0: i32, %arg1: memref<1x256xf32, #tpu.memory_space<vmem>>, %arg2: memref<1x256xf32, #tpu.memory_space<vmem>>) attributes {dimension_semantics = [#tpu.dimension_semantics<parallel>], iteration_bounds = array<i64: 1>, scalar_prefetch = 0 : i64, scratch_operands = 0 : i64, tpu.core_type = #tpu.core_type<tc>, window_params = [{transform_indices = @transform_0, window_bounds = array<i64: 1, 256>}, {transform_indices = @transform_1, window_bounds = array<i64: 1, 256>}]} {
    %c0 = arith.constant 0 : index
    %c0_0 = arith.constant 0 : index
    %0 = vector.load %arg1[%c0, %c0_0] : memref<1x256xf32, #tpu.memory_space<vmem>>, vector<1x256xf32>
    %cst = arith.constant 0.176776692 : f32
    %1 = vector.broadcast %cst : f32 to vector<1x256xf32>
    %2 = arith.mulf %0, %1 : vector<1x256xf32>
    %c0_1 = arith.constant 0 : index
    %c0_2 = arith.constant 0 : index
    %3 = vector.load %arg2[%c0_1, %c0_2] : memref<1x256xf32, #tpu.memory_space<vmem>>, vector<1x256xf32>
    tpu.vector_store %arg2[%c0_1, %c0_2], %2 {strides = array<i32>} : memref<1x256xf32, #tpu.memory_space<vmem>>, vector<1x256xf32>,
    return
  }
  func.func @transform_0(%arg0: i32) -> (i32, i32) {
    %c0_i32 = arith.constant 0 : i32
    %c0_i32_0 = arith.constant 0 : i32
    return %arg0, %c0_i32 : i32, i32
  }
  func.func @transform_1(%arg0: i32) -> (i32, i32) {
    %c0_i32 = arith.constant 0 : i32
    %c0_i32_0 = arith.constant 0 : i32
    return %arg0, %c0_i32 : i32, i32
  }
}

</mosaic_0001>

<llo_original>
// kernel: tpu_custom_call.1
$region0: #{tpu_custom_call.1}
  #allocation0 [shape = 'u32[]', space=smem, size = 0x4, offset = 0x4, fixed_abs, tag = 'smem constant byte address 0x4 - core index']
  #allocation1 [shape = 'u32[144,128]{1,0:T(1,128)}', space=vmem, size = 0x12000, scoped, tag = 'internal scratch']
  %s0 = inlined_call_operand.hbm [shape: f32[1,256], index: 0, kind: input, shape index: {}]
  %s1 = inlined_call_operand.hbm [shape: f32[1,256], index: 1, kind: output, shape index: {}]
  %s2 = sld [smem:[#allocation0]]
  $region18: #{tpu_custom_call.1} parent=0
    _
  %s4 = ssub.s32 1, %s2
  %s5 = scalar_select 0, %s4, %s2
  $region1: #{tpu_custom_call.1} parent=0
    #allocation2 [shape = 'u8[1024]{0}', space=vmem, size = 0x400, scoped, tag = 'input window, operand 0, single buffered']
    #allocation3 [shape = 's32[1]{0}', space=sflag, size = 0x4, scoped, tag = 'scoped memory for tpu_custom_call.1']
    #allocation4 [shape = 's32[1]{0}', space=sflag, size = 0x4, scoped, tag = 'scoped memory for tpu_custom_call.1']
    #allocation5 [shape = 'u8[1024]{0}', space=vmem, size = 0x400, scoped, tag = 'output window, operand 0, single buffered']
    %6 = vsyncpa [#allocation3], 0
    %7 = vsyncpa [#allocation4], 0
    // Predicated region
    $region2: #{tpu_custom_call.1} parent=1 // pred_check
      _
    $region3: #{tpu_custom_call.1} parent=1 // pred_check_branch
      %9 = sbr.rel (0) target = $region5
    $region4: #{tpu_custom_call.1} parent=1 // pred_region
      %s11 = ssub.s32 32, 32
      %12 = vsyncadd [#allocation3], %s11
      %s14 = sshll.u32 [#allocation2], 4
      %s15 = int_to_ptr.vmem [resolvable:$true] %s14
      %17 = dma.hbm_to_vmem [thread:$0]  %s0, 32, %s15, [#allocation3]
    $region5: #{tpu_custom_call.1} parent=1 // pred_fallthru
      _
    // Predicated region
    $region6: #{tpu_custom_call.1} parent=1 // pred_check
      _
    $region7: #{tpu_custom_call.1} parent=1 // pred_check_branch
      %19 = sbr.rel (0) target = $region9
    $region8: #{tpu_custom_call.1} parent=1 // pred_region
      %20 = dma.done [#allocation3], 32
    $region9: #{tpu_custom_call.1} parent=1 // pred_fallthru
      _
    %v21 = vld [vmem:[#allocation2] sm:$0x3]
    %v22 = vmul.f32 %v21, 0.17677669
    %v23 = vlaneseq
    %vm24 = vcmp.ge.s32.totalorder %v23, 0
    %vm25 = vcmp.lt.s32.totalorder %v23, 256
    %vm26 = vmand %vm24, %vm25
    %27 = vst.msk [vmem:[#allocation5] sm:$0x3] %vm26, %v22
    // Predicated region
    $region10: #{tpu_custom_call.1} parent=1 // pred_check
      _
    $region11: #{tpu_custom_call.1} parent=1 // pred_check_branch
      %29 = sbr.rel (0) target = $region13
    $region12: #{tpu_custom_call.1} parent=1 // pred_region
      %s31 = ssub.s32 32, 32
      %32 = vsyncadd [#allocation4], %s31
      %s34 = sshll.u32 [#allocation5], 4
      %s35 = int_to_ptr.vmem [resolvable:$true] %s34
      %37 = dma.vmem_to_hbm [thread:$0]  %s35, 32, %s1, [#allocation4]
    $region13: #{tpu_custom_call.1} parent=1 // pred_fallthru
      _
    // Predicated region
    $region14: #{tpu_custom_call.1} parent=1 // pred_check
      _
    $region15: #{tpu_custom_call.1} parent=1 // pred_check_branch
      %39 = sbr.rel (0) target = $region17
    $region16: #{tpu_custom_call.1} parent=1 // pred_region
      %40 = dma.done [#allocation4], 32
    $region17: #{tpu_custom_call.1} parent=1 // pred_fallthru
      _
    %41 = vsyncpa [#allocation3], 1
    %42 = vsyncpa [#allocation4], 1

</llo_original>
